<compile_context>
chip_gen: v7x
topology: tpu7x:2x2x1
jax: 0.10.0
libtpu: 0.0.40
codegen_flags: <defaults>
</compile_context>

<pallas_src>
import numpy as np

import jax
import jax.numpy as jnp
from jax import lax
from jax.experimental import pallas as pl
from jax.experimental.pallas import tpu as pltpu


def _round_up(x: int, m: int) -> int:
    return ((x + m - 1) // m) * m


_VMEM_LIMIT = 32 * 1024 * 1024  # scoped-VMEM request; safe on v5e/v6e/v7x.


# ---------------------------------------------------------------------------
# Kernels
# ---------------------------------------------------------------------------
def _encoder_kernel(x_ref, w_ref, z_ref):
    # Tiled Z = X @ W.  bf16 operands on the MXU, f32 accumulation directly in
    # the resident output block across the k grid axis (no VMEM scratch).
    @pl.when(pl.program_id(2) == 0)
    def _():
        z_ref[...] = jnp.zeros_like(z_ref)

    z_ref[...] += jnp.dot(
        x_ref[...], w_ref[...], preferred_element_type=jnp.float32
    )


def _decode_all_kernel(zi_ref, zj_ref, adj_ref, acc_ref):
    # adj tile (i, j) = sigmoid( Z_i @ Z_j^T ), contracted over a tiled D axis
    # (grid axis 2) with an f32 VMEM accumulator; bf16 MXU operands; no
    # in-kernel transpose (dot_general contracts dim 1 of both operands).
    @pl.when(pl.program_id(2) == 0)
    def _():
        acc_ref[...] = jnp.zeros_like(acc_ref)

    acc_ref[...] += lax.dot_general(
        zi_ref[...],
        zj_ref[...],
        dimension_numbers=(((1,), (1,)), ((), ())),
        preferred_element_type=jnp.float32,
    )

    @pl.when(pl.program_id(2) == pl.num_programs(2) - 1)
    def _():
        logits = acc_ref[...]
        if adj_ref.dtype == jnp.float32:
            prob = jax.nn.sigmoid(logits)  # exact path for f32 output
        else:
            # EUP exp + approximate EUP reciprocal keeps the VALU free; the
            # approximation error is far below one bf16 ulp.
            prob = pl.reciprocal(1.0 + jnp.exp(-logits), approx=True)
        adj_ref[...] = prob.astype(adj_ref.dtype)


def _decode_edges_kernel(zs_ref, zd_ref, out_ref):
    # Blocks are (TB, Dp, 128): 128 edges on lanes (dense), D on sublanes.
    # Elementwise math in f32 (v5e VPU/EUP have no bf16); reduction over the
    # sublane (D) axis; lane-dense (TB, 128) output stores (no masked vst).
    zs = zs_ref[...].astype(jnp.float32)
    zd = zd_ref[...].astype(jnp.float32)
    val = jnp.sum(zs * zd, axis=1)  # (TB, 128)
    out_ref[...] = jax.nn.sigmoid(val).astype(out_ref.dtype)


# ---------------------------------------------------------------------------
# Wrappers
# ---------------------------------------------------------------------------
def gae_encode(x, w):
    """Pallas tiled linear encoder Z = X @ W.  x: (N, F), w: (F, D) -> f32 (N, D)."""
    N, F = x.shape
    F2, D = w.shape
    assert F2 == F

    TM = min(512, _round_up(N, 8))        # sublane-aligned row tile
    TN = min(512, _round_up(D, 128))      # lane-aligned output-col tile
    TK = _round_up(F, 128) if F <= 2048 else 512   # single k step when F fits
    Np, Fp, Dp = _round_up(N, TM), _round_up(F, TK), _round_up(D, TN)

    xb = x.astype(jnp.bfloat16)           # bf16 MXU operands, half the DMA
    wb = w.astype(jnp.bfloat16)
    if (Np, Fp) != (N, F):
        xb = jnp.pad(xb, ((0, Np - N), (0, Fp - F)))
    if (Fp, Dp) != (F, D):
        wb = jnp.pad(wb, ((0, Fp - F), (0, Dp - D)))

    grid = (Np // TM, Dp // TN, Fp // TK)
    zp = pl.pallas_call(
        _encoder_kernel,
        out_shape=jax.ShapeDtypeStruct((Np, Dp), jnp.float32),
        grid_spec=pltpu.PrefetchScalarGridSpec(
            num_scalar_prefetch=0,
            grid=grid,
            in_specs=[
                pl.BlockSpec((TM, TK), lambda i, j, k: (i, k)),
                pl.BlockSpec((TK, TN), lambda i, j, k: (k, j)),
            ],
            out_specs=pl.BlockSpec((TM, TN), lambda i, j, k: (i, j)),
        ),
        compiler_params=pltpu.CompilerParams(
            dimension_semantics=("parallel", "parallel", "arbitrary"),
            vmem_limit_bytes=_VMEM_LIMIT,
        ),
        cost_estimate=pl.CostEstimate(
            flops=2 * Np * Dp * Fp,
            transcendentals=0,
            bytes_accessed=(
                2 * Np * Fp * (Dp // TN)      # X re-read per output-col tile
                + 2 * Fp * Dp * (Np // TM)    # W re-read per output-row tile
                + 4 * Np * Dp                 # f32 Z writeback
            ),
        ),
    )(xb, wb)
    if (Np, Dp) != (N, D):
        zp = zp[:N, :D]
    return zp


def gae_decode_all(z, out_dtype=jnp.bfloat16):
    """InnerProductDecoder.forward_all: sigmoid(Z @ Z^T).

    z: (N, D) -> (N, N) in `out_dtype` (default bf16: the kernel is
    HBM-writeback-bound; bf16 halves the N^2 stream while the MXU still
    accumulates in f32).
    """
    N, D = z.shape

    TILE = min(512, _round_up(N, 128))    # (TILE, TILE) output tile
    TD = min(512, _round_up(D, 128))      # lane-aligned contraction tile
    Np = _round_up(N, TILE)
    Dp = _round_up(D, TD)

    zb = z.astype(jnp.bfloat16)
    if (Np, Dp) != (N, D):
        zb = jnp.pad(zb, ((0, Np - N), (0, Dp - D)))

    out_bytes = np.dtype(out_dtype).itemsize
    grid = (Np // TILE, Np // TILE, Dp // TD)
    adj = pl.pallas_call(
        _decode_all_kernel,
        out_shape=jax.ShapeDtypeStruct((Np, Np), out_dtype),
        grid_spec=pltpu.PrefetchScalarGridSpec(
            num_scalar_prefetch=0,
            grid=grid,
            in_specs=[
                pl.BlockSpec((TILE, TD), lambda i, j, k: (i, k)),
                pl.BlockSpec((TILE, TD), lambda i, j, k: (j, k)),
            ],
            out_specs=pl.BlockSpec((TILE, TILE), lambda i, j, k: (i, j)),
            scratch_shapes=[pltpu.VMEM((TILE, TILE), jnp.float32)],
        ),
        compiler_params=pltpu.CompilerParams(
            dimension_semantics=("parallel", "parallel", "arbitrary"),
            vmem_limit_bytes=_VMEM_LIMIT,
        ),
        cost_estimate=pl.CostEstimate(
            flops=2 * Np * Np * Dp,
            transcendentals=Np * Np,
            bytes_accessed=2 * 2 * Np * Dp * (Np // TILE) + Np * Np * out_bytes,
        ),
    )(zb, zb)
    # TODO(synk): exploit adjacency symmetry (compute only j >= i tiles and
    # mirror) if the consumer can accept it — halves MXU work and writeback.
    if Np != N:
        adj = adj[:N, :N]
    return adj


def gae_decode(z, edge_index, compute_dtype=jnp.bfloat16):
    """InnerProductDecoder.forward: sigmoid((z[src] * z[dst]).sum(-1)).

    z: (N, D), edge_index: (2, E) int32 -> f32 (E,)

    Gathered src/dst rows are produced in bf16 (halves the HBM round trip of
    the gather) and in a lane-dense (rows, Dp, 128) layout: 128 edges on
    lanes, D on sublanes.  Each grid step covers TB*128 edges (8K-32K).
    """
    E = edge_index.shape[1]
    N, D = z.shape

    LANES = 128
    Dp = _round_up(D, 16)                 # sublane-aligned for bf16 packing
    # Edges per step: keep each bf16 input block around <= 1 MiB.
    TB = max(8, min(256, (4096 // Dp) // 8 * 8))
    TB = min(TB, _round_up(-(-E // LANES), 8))     # don't over-pad tiny E
    EDGES_PER_STEP = TB * LANES
    Ep = _round_up(E, EDGES_PER_STEP)
    R = Ep // LANES

    zb = z.astype(compute_dtype)
    if Dp != D:
        zb = jnp.pad(zb, ((0, 0), (0, Dp - D)))
    src = edge_index[0]
    dst = edge_index[1]
    if Ep != E:
        src = jnp.pad(src, (0, Ep - E))
        dst = jnp.pad(dst, (0, Ep - E))
    # TODO(synk): move this gather fully in-kernel (Z resident in VMEM +
    # scalar-prefetched edge_index) to avoid materializing the gathered rows
    # in HBM at all.
    z_src = jnp.swapaxes(jnp.take(zb, src, axis=0).reshape(R, LANES, Dp), 1, 2)
    z_dst = jnp.swapaxes(jnp.take(zb, dst, axis=0).reshape(R, LANES, Dp), 1, 2)

    grid = (R // TB,)
    gathered_bytes = np.dtype(compute_dtype).itemsize
    out = pl.pallas_call(
        _decode_edges_kernel,
        out_shape=jax.ShapeDtypeStruct((R, LANES), jnp.float32),
        grid_spec=pltpu.PrefetchScalarGridSpec(
            num_scalar_prefetch=0,
            grid=grid,
            in_specs=[
                pl.BlockSpec((TB, Dp, LANES), lambda b: (b, 0, 0)),
                pl.BlockSpec((TB, Dp, LANES), lambda b: (b, 0, 0)),
            ],
            out_specs=pl.BlockSpec((TB, LANES), lambda b: (b, 0)),
        ),
        compiler_params=pltpu.CompilerParams(
            dimension_semantics=("parallel",),
            vmem_limit_bytes=_VMEM_LIMIT,
        ),
        cost_estimate=pl.CostEstimate(
            flops=2 * Ep * Dp,
            transcendentals=Ep,
            bytes_accessed=2 * Ep * Dp * gathered_bytes + Ep * 4,
        ),
    )(z_src, z_dst)
    return out.reshape(Ep)[:E]


def gae_forward(x, w):
    """GAE.forward == GAE.encode == encoder(x)."""
    return gae_encode(x, w)


# ---------------------------------------------------------------------------
# Main
# ---------------------------------------------------------------------------
if __name__ == "__main__":
    key = jax.random.PRNGKey(0)
    k_x, k_w, k_e = jax.random.split(key, 3)

    N, F, D, E = 64, 48, 16, 200   # nodes, in-features, latent dim, num edges

    x = jax.random.normal(k_x, (N, F), dtype=jnp.float32)
    w = jax.random.normal(k_w, (F, D), dtype=jnp.float32) * 0.1
    edge_index = jax.random.randint(k_e, (2, E), 0, N, dtype=jnp.int32)

    # GAE.forward (== encode): latent Z
    z = jax.block_until_ready(gae_forward(x, w))

    # InnerProductDecoder per-edge decode
    edge_probs = jax.block_until_ready(gae_decode(z, edge_index))

    # InnerProductDecoder.forward_all dense decode
    adj = jax.block_until_ready(gae_decode_all(z))

    # Reference check in plain JAX.  bf16 MXU operands / bf16 adj output mean
    # a loose (but tight-for-bf16) tolerance against the f32 reference.
    z_ref = x @ w
    adj_ref = jax.nn.sigmoid(z_ref @ z_ref.T)
    ep_ref = jax.nn.sigmoid(
        jnp.sum(z_ref[edge_index[0]] * z_ref[edge_index[1]], axis=1)
    )
    assert z.shape == (N, D) and adj.shape == (N, N) and edge_probs.shape == (E,)
    assert jnp.allclose(z, z_ref, rtol=2e-2, atol=2e-2)
    assert jnp.allclose(adj.astype(jnp.float32), adj_ref, rtol=0, atol=3e-2)
    assert jnp.allclose(edge_probs, ep_ref, rtol=0, atol=3e-2)

    # TODO(synk): recon_loss / test() (negative sampling, sklearn AUC/AP) are
    # host-side training utilities, not part of the forward hot path.
    print("KERNEL_OK")
</pallas_src>

<mosaic_0001>
module attributes {stable_mosaic.version = 11 : i64} {
  func.func @_encoder_kernel(%arg0: i32, %arg1: i32, %arg2: i32, %arg3: memref<64x128xbf16, #tpu.memory_space<vmem>>, %arg4: memref<128x128xbf16, #tpu.memory_space<vmem>>, %arg5: memref<64x128xf32, #tpu.memory_space<vmem>>) attributes {dimension_semantics = [#tpu.dimension_semantics<parallel>, #tpu.dimension_semantics<parallel>, #tpu.dimension_semantics<arbitrary>], iteration_bounds = array<i64: 1, 1, 1>, scalar_prefetch = 0 : i64, scratch_operands = 0 : i64, tpu.core_type = #tpu.core_type<tc>, window_params = [{transform_indices = @transform_0, window_bounds = array<i64: 64, 128>}, {transform_indices = @transform_1, window_bounds = array<i64: 128, 128>}, {transform_indices = @transform_2, window_bounds = array<i64: 64, 128>}]} {
    %c0_i32 = arith.constant 0 : i32
    %0 = arith.cmpi eq, %arg2, %c0_i32 : i32
    %1 = arith.extui %0 : i1 to i32
    %c0_i32_0 = arith.constant 0 : i32
    %2 = arith.cmpi ne, %1, %c0_i32_0 : i32
    scf.if %2 {
      %cst_8 = arith.constant 0.000000e+00 : f32
      %9 = vector.broadcast %cst_8 : f32 to vector<64x128xf32>
      %c0_9 = arith.constant 0 : index
      %c0_10 = arith.constant 0 : index
      %10 = vector.load %arg5[%c0_9, %c0_10] : memref<64x128xf32, #tpu.memory_space<vmem>>, vector<64x128xf32>
      tpu.vector_store %arg5[%c0_9, %c0_10], %9 {strides = array<i32>} : memref<64x128xf32, #tpu.memory_space<vmem>>, vector<64x128xf32>,
    } else {
    }
    %c0 = arith.constant 0 : index
    %c0_1 = arith.constant 0 : index
    %3 = vector.load %arg5[%c0, %c0_1] : memref<64x128xf32, #tpu.memory_space<vmem>>, vector<64x128xf32>
    %c0_2 = arith.constant 0 : index
    %c0_3 = arith.constant 0 : index
    %4 = vector.load %arg3[%c0_2, %c0_3] : memref<64x128xbf16, #tpu.memory_space<vmem>>, vector<64x128xbf16>
    %c0_4 = arith.constant 0 : index
    %c0_5 = arith.constant 0 : index
    %5 = vector.load %arg4[%c0_4, %c0_5] : memref<128x128xbf16, #tpu.memory_space<vmem>>, vector<128x128xbf16>
    %cst = arith.constant dense<0.000000e+00> : vector<64x128xf32>
    %6 = tpu.matmul %4, %5, %cst {dimension_numbers = #tpu.dot_dimension_numbers<[1], [0], [0], [1], [0, 0, 1, 1], [], []>} : vector<64x128xbf16>, vector<128x128xbf16>, vector<64x128xf32> -> vector<64x128xf32>
    %7 = arith.addf %3, %6 : vector<64x128xf32>
    %c0_6 = arith.constant 0 : index
    %c0_7 = arith.constant 0 : index
    %8 = vector.load %arg5[%c0_6, %c0_7] : memref<64x128xf32, #tpu.memory_space<vmem>>, vector<64x128xf32>
    tpu.vector_store %arg5[%c0_6, %c0_7], %7 {strides = array<i32>} : memref<64x128xf32, #tpu.memory_space<vmem>>, vector<64x128xf32>,
    return
  }
  func.func @transform_0(%arg0: i32, %arg1: i32, %arg2: i32) -> (i32, i32) {
    %c0_i32 = arith.constant 0 : i32
    return %arg0, %arg2 : i32, i32
  }
  func.func @transform_1(%arg0: i32, %arg1: i32, %arg2: i32) -> (i32, i32) {
    %c0_i32 = arith.constant 0 : i32
    return %arg2, %arg1 : i32, i32
  }
  func.func @transform_2(%arg0: i32, %arg1: i32, %arg2: i32) -> (i32, i32) {
    %c0_i32 = arith.constant 0 : i32
    return %arg0, %arg1 : i32, i32
  }
}

</mosaic_0001>

<llo_original>
// kernel: tpu_custom_call.1
$region0: #{tpu_custom_call.1}
  #allocation0 [shape = 'u32[]', space=smem, size = 0x4, offset = 0x4, fixed_abs, tag = 'smem constant byte address 0x4 - core index']
  #allocation1 [shape = 'u32[144,128]{1,0:T(1,128)}', space=vmem, size = 0x12000, scoped, tag = 'internal scratch']
  %s0 = inlined_call_operand.hbm [shape: bf16[64,128], index: 0, kind: input, shape index: {}]
  %s1 = inlined_call_operand.hbm [shape: bf16[128,128], index: 1, kind: input, shape index: {}]
  %s2 = inlined_call_operand.hbm [shape: f32[64,128], index: 2, kind: output, shape index: {}]
  %s3 = sld [smem:[#allocation0]]
  $region30: #{tpu_custom_call.1} parent=0
    _
  %s5 = ssub.s32 1, %s3
  %s6 = scalar_select 0, %s5, %s3
  $region1: #{tpu_custom_call.1} parent=0
    #allocation2 [shape = 'u8[16384]{0}', space=vmem, size = 0x4000, scoped, tag = 'input window, operand 0, single buffered']
    #allocation3 [shape = 's32[1]{0}', space=sflag, size = 0x4, scoped, tag = 'scoped memory for tpu_custom_call.1']
    #allocation4 [shape = 's32[1]{0}', space=sflag, size = 0x4, scoped, tag = 'scoped memory for tpu_custom_call.1']
    #allocation5 [shape = 'u8[32768]{0}', space=vmem, size = 0x8000, scoped, tag = 'input window, operand 1, single buffered']
    #allocation6 [shape = 's32[1]{0}', space=sflag, size = 0x4, scoped, tag = 'scoped memory for tpu_custom_call.1']
    #allocation7 [shape = 'u8[32768]{0}', space=vmem, size = 0x8000, scoped, tag = 'output window, operand 0, single buffered']
    %7 = vsyncpa [#allocation3], 0
    %8 = vsyncpa [#allocation6], 0
    %9 = vsyncpa [#allocation4], 0
    // Predicated region
    $region2: #{tpu_custom_call.1} parent=1 // pred_check
      _
    $region3: #{tpu_custom_call.1} parent=1 // pred_check_branch
      %11 = sbr.rel (0) target = $region5
    $region4: #{tpu_custom_call.1} parent=1 // pred_region
      %s13 = ssub.s32 512, 512
      %14 = vsyncadd [#allocation3], %s13
      %s15 = sshll.u32 [#allocation2], 4
      %s16 = int_to_ptr.vmem [resolvable:$true] %s15
      %21 = dma.hbm_to_vmem [thread:$0]  %s0, 512, %s16, [#allocation3], 64, 64, 4
    $region5: #{tpu_custom_call.1} parent=1 // pred_fallthru
      _
    // Predicated region
    $region6: #{tpu_custom_call.1} parent=1 // pred_check
      _
    $region7: #{tpu_custom_call.1} parent=1 // pred_check_branch
      %23 = sbr.rel (0) target = $region9
    $region8: #{tpu_custom_call.1} parent=1 // pred_region
      %s25 = ssub.s32 1024, 1024
      %26 = vsyncadd [#allocation6], %s25
      %s27 = sshll.u32 [#allocation5], 4
      %s28 = int_to_ptr.vmem [resolvable:$true] %s27
      %33 = dma.hbm_to_vmem [thread:$0]  %s1, 1024, %s28, [#allocation6], 64, 64, 4
    $region9: #{tpu_custom_call.1} parent=1 // pred_fallthru
      _
    // Predicated region
    $region10: #{tpu_custom_call.1} parent=1 // pred_check
      _
    $region11: #{tpu_custom_call.1} parent=1 // pred_check_branch
      %35 = sbr.rel (0) target = $region13
    $region12: #{tpu_custom_call.1} parent=1 // pred_region
      %36 = dma.done [#allocation3], 512
    $region13: #{tpu_custom_call.1} parent=1 // pred_fallthru
      _
    // Predicated region
    $region14: #{tpu_custom_call.1} parent=1 // pred_check
      _
    $region15: #{tpu_custom_call.1} parent=1 // pred_check_branch
      %38 = sbr.rel (0) target = $region17
    $region16: #{tpu_custom_call.1} parent=1 // pred_region
      %39 = dma.done [#allocation6], 1024
    $region17: #{tpu_custom_call.1} parent=1 // pred_fallthru
      _
    %p41 = scmp.eq.s32.totalorder 0, 0
    // Predicated region
    $region18: #{tpu_custom_call.1} parent=1 // pred_check
      %p42 = pneg %p41
    $region19: #{tpu_custom_call.1} parent=1 // pred_check_branch
      %44 = sbr.rel (%p42) target = $region21
    $region20: #{tpu_custom_call.1} parent=1 // pred_region
      %45 = vst [vmem:[#allocation7] sm:$0xff] 0.0
      %46 = vst [vmem:[#allocation7 + $0x8] sm:$0xff] 0.0
      %47 = vst [vmem:[#allocation7 + $0x10] sm:$0xff] 0.0
      %48 = vst [vmem:[#allocation7 + $0x18] sm:$0xff] 0.0
      %49 = vst [vmem:[#allocation7 + $0x20] sm:$0xff] 0.0
      %50 = vst [vmem:[#allocation7 + $0x28] sm:$0xff] 0.0
      %51 = vst [vmem:[#allocation7 + $0x30] sm:$0xff] 0.0
      %52 = vst [vmem:[#allocation7 + $0x38] sm:$0xff] 0.0
    $region21: #{tpu_custom_call.1} parent=1 // pred_fallthru
      _
    %v53 = vld [vmem:[#allocation7] sm:$0xff]
    %v54 = vld [vmem:[#allocation7 + $0x8] sm:$0xff]
    %v55 = vld [vmem:[#allocation7 + $0x10] sm:$0xff]
    %v56 = vld [vmem:[#allocation7 + $0x18] sm:$0xff]
    %v57 = vld [vmem:[#allocation7 + $0x20] sm:$0xff]
    %v58 = vld [vmem:[#allocation7 + $0x28] sm:$0xff]
    %v59 = vld [vmem:[#allocation7 + $0x30] sm:$0xff]
    %v60 = vld [vmem:[#allocation7 + $0x38] sm:$0xff]
    %v61 = vld [vmem:[#allocation2] sm:$0xf]
    %v62 = vld [vmem:[#allocation2 + $0x4] sm:$0xf]
    %v63 = vld [vmem:[#allocation2 + $0x8] sm:$0xf]
    %v64 = vld [vmem:[#allocation2 + $0xc] sm:$0xf]
    %v65 = vld [vmem:[#allocation2 + $0x10] sm:$0xf]
    %v66 = vld [vmem:[#allocation2 + $0x14] sm:$0xf]
    %v67 = vld [vmem:[#allocation2 + $0x18] sm:$0xf]
    %v68 = vld [vmem:[#allocation2 + $0x1c] sm:$0xf]
    %v69 = vld [vmem:[#allocation5] sm:$0xf]
    %v70 = vld [vmem:[#allocation5 + $0x4] sm:$0xf]
    %v71 = vld [vmem:[#allocation5 + $0x8] sm:$0xf]
    %v72 = vld [vmem:[#allocation5 + $0xc] sm:$0xf]
    %v73 = vld [vmem:[#allocation5 + $0x10] sm:$0xf]
    %v74 = vld [vmem:[#allocation5 + $0x14] sm:$0xf]
    %v75 = vld [vmem:[#allocation5 + $0x18] sm:$0xf]
    %v76 = vld [vmem:[#allocation5 + $0x1c] sm:$0xf]
    %v77 = vld [vmem:[#allocation5 + $0x20] sm:$0xf]
    %v78 = vld [vmem:[#allocation5 + $0x24] sm:$0xf]
    %v79 = vld [vmem:[#allocation5 + $0x28] sm:$0xf]
    %v80 = vld [vmem:[#allocation5 + $0x2c] sm:$0xf]
    %v81 = vld [vmem:[#allocation5 + $0x30] sm:$0xf]
    %v82 = vld [vmem:[#allocation5 + $0x34] sm:$0xf]
    %v83 = vld [vmem:[#allocation5 + $0x38] sm:$0xf]
    %v84 = vld [vmem:[#allocation5 + $0x3c] sm:$0xf]
    %v93 = vunpack.c.l.b16 %v61
    %v94 = vunpack.c.l.b16 %v62
    %v95 = vunpack.c.l.b16 %v63
    %v96 = vunpack.c.l.b16 %v64
    %v97 = vunpack.c.l.b16 %v65
    %v98 = vunpack.c.l.b16 %v66
    %v99 = vunpack.c.l.b16 %v67
    %v100 = vunpack.c.l.b16 %v68
    %v101 = vpack.c.b16 %v94, %v93
    %v102 = vpack.c.b16 %v96, %v95
    %v103 = vpack.c.b16 %v98, %v97
    %v104 = vpack.c.b16 %v100, %v99
    %v125 = vunpack.c.l.b16 %v69
    %v126 = vunpack.c.l.b16 %v70
    %v127 = vunpack.c.l.b16 %v71
    %v128 = vunpack.c.l.b16 %v72
    %v129 = vunpack.c.l.b16 %v73
    %v130 = vunpack.c.l.b16 %v74
    %v131 = vunpack.c.l.b16 %v75
    %v132 = vunpack.c.l.b16 %v76
    %v133 = vunpack.c.l.b16 %v77
    %v134 = vunpack.c.l.b16 %v78
    %v135 = vunpack.c.l.b16 %v79
    %v136 = vunpack.c.l.b16 %v80
    %v137 = vunpack.c.l.b16 %v81
    %v138 = vunpack.c.l.b16 %v82
    %v139 = vunpack.c.l.b16 %v83
    %v140 = vunpack.c.l.b16 %v84
    %v141 = vpack.c.b16 %v126, %v125
    %v142 = vpack.c.b16 %v128, %v127
    %v143 = vpack.c.b16 %v130, %v129
    %v144 = vpack.c.b16 %v132, %v131
    %v145 = vpack.c.b16 %v134, %v133
    %v146 = vpack.c.b16 %v136, %v135
    %v147 = vpack.c.b16 %v138, %v137
    %v148 = vpack.c.b16 %v140, %v139
    %157 = vmatprep.subr.bf16.mxu0 0
    %158 = vmatpush1.bf16.msra.mxu0 %v141
    %159 = vmatprep.subr.bf16.mxu0 0
    %160 = vmatpush1.bf16.msra.mxu0 %v142
    %161 = vmatprep.subr.bf16.mxu0 0
    %162 = vmatpush1.bf16.msra.mxu0 %v143
    %163 = vmatprep.subr.bf16.mxu0 0
    %164 = vmatpush1.bf16.msra.mxu0 %v144
    %165 = vmatprep.subr.bf16.mxu0 0
    %166 = vmatpush1.bf16.msra.mxu0 %v145
    %167 = vmatprep.subr.bf16.mxu0 0
    %168 = vmatpush1.bf16.msra.mxu0 %v146
    %169 = vmatprep.subr.bf16.mxu0 0
    %170 = vmatpush1.bf16.msra.mxu0 %v147
    %171 = vmatprep.subr.bf16.mxu0 0
    %172 = vmatpush1.bf16.msra.mxu0 %v148
    %173 = vmatprep.subr.bf16.mxu0 0
    %174 = vmatpush1.bf16.msra.mxu0 0
    %175 = vmatprep.subr.bf16.mxu0 0
    %176 = vmatpush1.bf16.msra.mxu0 0
    %177 = vmatprep.subr.bf16.mxu0 0
    %178 = vmatpush1.bf16.msra.mxu0 0
    %179 = vmatprep.subr.bf16.mxu0 0
    %180 = vmatpush1.bf16.msra.mxu0 0
    %181 = vmatprep.subr.bf16.mxu0 0
    %182 = vmatpush1.bf16.msra.mxu0 0
    %183 = vmatprep.subr.bf16.mxu0 0
    %184 = vmatpush1.bf16.msra.mxu0 0
    %185 = vmatprep.subr.bf16.mxu0 0
    %186 = vmatpush1.bf16.msra.mxu0 0
    %187 = vmatprep.subr.bf16.mxu0 0
    %188 = vmatpush1.bf16.msra.mxu0 0
    %189 = vmatprep.mubr.bf16.mxu0 0
    %190 = vmatmul.mubr.bf16.gmra.mrb[0].mxu0 %v101
    %v191 = vpop.f32.mrb[0].mxu0
    %v192 = vadd.f32 0.0, %v191
    %v193 = vpop.f32.mrb[0].mxu0
    %v194 = vpop.f32.mrb[0].mxu0
    %v195 = vadd.f32 0.0, %v194
    %v196 = vpop.f32.mrb[0].mxu0
    %197 = vmatprep.mubr.bf16.mxu0 0
    %198 = vmatmul.mubr.bf16.gmra.mrb[0].mxu0 %v102
    %v199 = vpop.f32.mrb[0].mxu0
    %v200 = vadd.f32 0.0, %v199
    %v201 = vpop.f32.mrb[0].mxu0
    %v202 = vpop.f32.mrb[0].mxu0
    %v203 = vadd.f32 0.0, %v202
    %v204 = vpop.f32.mrb[0].mxu0
    %205 = vmatprep.mubr.bf16.mxu0 0
    %206 = vmatmul.mubr.bf16.gmra.mrb[0].mxu0 %v103
    %v207 = vpop.f32.mrb[0].mxu0
    %v208 = vadd.f32 0.0, %v207
    %v209 = vpop.f32.mrb[0].mxu0
    %v210 = vpop.f32.mrb[0].mxu0
    %v211 = vadd.f32 0.0, %v210
    %v212 = vpop.f32.mrb[0].mxu0
    %213 = vmatprep.mubr.bf16.mxu0 0
    %214 = vmatmul.mubr.bf16.gmra.mrb[0].mxu0 %v104
    %v215 = vpop.f32.mrb[0].mxu0
    %v216 = vadd.f32 0.0, %v215
    %v217 = vpop.f32.mrb[0].mxu0
    %v218 = vpop.f32.mrb[0].mxu0
    %v219 = vadd.f32 0.0, %v218
    %v220 = vpop.f32.mrb[0].mxu0
    %221 = vdwg.mxu0
    %v222 = vadd.f32 %v53, %v192
    %v223 = vadd.f32 %v54, %v195
    %v224 = vadd.f32 %v55, %v200
    %v225 = vadd.f32 %v56, %v203
    %v226 = vadd.f32 %v57, %v208
    %v227 = vadd.f32 %v58, %v211
    %v228 = vadd.f32 %v59, %v216
    %v229 = vadd.f32 %v60, %v219
    %230 = vst [vmem:[#allocation7] sm:$0xff] %v222
    %231 = vst [vmem:[#allocation7 + $0x8] sm:$0xff] %v223
    %232 = vst [vmem:[#allocation7 + $0x10] sm:$0xff] %v224
    %233 = vst [vmem:[#allocation7 + $0x18] sm:$0xff] %v225
    %234 = vst [vmem:[#allocation7 + $0x20] sm:$0xff] %v226
    %235 = vst [vmem:[#allocation7 + $0x28] sm:$0xff] %v227
    %236 = vst [vmem:[#allocation7 + $0x30] sm:$0xff] %v228
    %237 = vst [vmem:[#allocation7 + $0x38] sm:$0xff] %v229
    // Predicated region
    $region22: #{tpu_custom_call.1} parent=1 // pred_check
      _
    $region23: #{tpu_custom_call.1} parent=1 // pred_check_branch
      %239 = sbr.rel (0) target = $region25
    $region24: #{tpu_custom_call.1} parent=1 // pred_region
      %s241 = ssub.s32 1024, 1024
      %242 = vsyncadd [#allocation4], %s241
      %s243 = sshll.u32 [#allocation7], 4
      %s244 = int_to_ptr.vmem [resolvable:$true] %s243
      %249 = dma.vmem_to_hbm [thread:$0]  %s244, 1024, %s2, [#allocation4], 128, 128, 8
    $region25: #{tpu_custom_call.1} parent=1 // pred_fallthru
      _
    // Predicated region
    $region26: #{tpu_custom_call.1} parent=1 // pred_check
      _
    $region27: #{tpu_custom_call.1} parent=1 // pred_check_branch
      %251 = sbr.rel (0) target = $region29
    $region28: #{tpu_custom_call.1} parent=1 // pred_region
      %252 = dma.done [#allocation4], 1024
    $region29: #{tpu_custom_call.1} parent=1 // pred_fallthru
      _
    %253 = vsyncpa [#allocation3], 1
    %254 = vsyncpa [#allocation6], 1
    %255 = vsyncpa [#allocation4], 1

</llo_original>
